<compile_context>
chip_gen: v7x
topology: tpu7x:2x2x1
jax: 0.10.0
libtpu: 0.0.40
codegen_flags: <defaults>
</compile_context>

<pallas_src>
import functools

import jax
import jax.numpy as jnp
from jax.experimental import pallas as pl
from jax.experimental.pallas import tpu as pltpu


def _round_up(x, m):
    return (x + m - 1) // m * m


def _choose_cb(c, v):
    """How many codebooks to fuse per grid step (lane-dense fused width)."""
    divisors = [d for d in range(1, c + 1) if c % d == 0]
    dense = [d for d in divisors if (d * v) % 128 == 0 and d * v <= 512]
    if dense:
        return max(dense)
    # Fall back to fusing everything: the fused width then equals in_features,
    # which always satisfies the "block dim == full array dim" layout rule.
    return c


def _choose_tn(n):
    if n <= 256:
        return _round_up(n, 8)
    return 256


def _vmem_limit_bytes(tn, gv, k, cb, o_pad):
    f32 = 4
    need = f32 * (
        2 * tn * gv            # x block (double buffered)
        + 2 * gv * o_pad       # weight block
        + 2 * gv * k           # transposed centroid block
        + 2 * cb * k * o_pad   # lut block
        + 2 * o_pad            # bias
        + 2 * tn * o_pad       # output block
        + 2 * 8 * 128          # loss partials
        + tn * o_pad           # quant accumulator scratch
        + tn * cb * k          # fused one-hot scratch
    )
    return int(max(32 * 1024 * 1024, min(2 * need + (4 << 20), 100 * 1024 * 1024)))


def _lut_linear_kernel(x_ref, w_ref, centT_ref, lut_ref, bias_ref,
                       out_ref, loss_ref,
                       quant_acc, oh_scratch, *, n_rows):
    ni = pl.program_id(0)
    gi = pl.program_id(1)

    tn, gv = x_ref.shape
    k = centT_ref.shape[2]
    cb = lut_ref.shape[1] // k
    v = gv // cb

    @pl.when(gi == 0)
    def _():
        out_ref[...] = jnp.zeros_like(out_ref)        # soft accumulator
        quant_acc[...] = jnp.zeros_like(quant_acc)

    x = x_ref[...]                                    # (TN, CB*V)
    centT = centT_ref[0]                              # (CB*V, K)

    # soft contribution: single lane-dense, full-depth MXU matmul.
    out_ref[...] += jnp.dot(x, w_ref[...], preferred_element_type=jnp.float32)

    # Chebyshev (p=inf) nearest centroid per codebook, streamed over V so the
    # working set stays at (TN, K); no (TN, K, V) intermediate.
    iota_k = jax.lax.broadcasted_iota(jnp.int32, (tn, k), 1)
    for j in range(cb):
        dist = None
        for vv in range(v):
            idx = j * v + vv
            col = x[:, idx:idx + 1]                    # (TN, 1)
            crow = centT[idx:idx + 1, :]               # (1, K)
            d = jnp.abs(col - crow)                    # (TN, K)
            dist = d if dist is None else jnp.maximum(dist, d)
        amin = jnp.argmin(dist, axis=-1)               # (TN,), first-index ties
        oh_scratch[:, j * k:(j + 1) * k] = (
            amin[:, None] == iota_k).astype(jnp.float32)

    # quant contribution: one fused (TN, CB*K) @ (CB*K, O_pad) MXU matmul.
    quant_acc[...] += jnp.dot(oh_scratch[...], lut_ref[0],
                              preferred_element_type=jnp.float32)

    @pl.when(gi == pl.num_programs(1) - 1)
    def _():
        soft = out_ref[...]
        quant = quant_acc[...]
        # Mask rows that only exist because of N padding before the loss sum.
        row = jax.lax.broadcasted_iota(jnp.int32, (tn, 1), 0) + ni * tn
        valid = (row < n_rows).astype(jnp.float32)
        d2 = (quant - soft) * (quant - soft) * valid
        loss_ref[...] = jnp.full(loss_ref.shape, jnp.sum(d2), jnp.float32)
        # STE forward value is exactly quant; add bias and overwrite the output.
        out_ref[...] = (quant + bias_ref[...]).astype(out_ref.dtype)


@functools.partial(jax.jit, static_argnames=("vec_len", "ncentroids"))
def lut_linear_forward(x, weight, centroids_w, bias, *, vec_len, ncentroids):
    """LUTLinear_t.forward.

    x: (B, S, F) or (B, F) float32; weight: (F, O); centroids_w: (C, K*V); bias: (O,)
    Returns (output, lut_loss).
    """
    squeeze_seq = (x.ndim == 2)
    if squeeze_seq:
        b, f = x.shape
        s = 1
    else:
        b, s, f = x.shape
    o = weight.shape[1]
    v = vec_len
    k = ncentroids
    c = f // v                       # ncodebooks (nsharecodebooks = 1)
    n = b * s

    cb = _choose_cb(c, v)            # codebooks fused per grid step
    cg = c // cb                     # number of fused groups (reduction axis)
    gv = cb * v
    o_pad = _round_up(o, 128)
    tn = _choose_tn(n)
    n_pad = _round_up(n, tn)
    nt = n_pad // tn

    # ---- wrapper-side layout prep (plain XLA, cheap / x-independent) -------
    x2 = x.reshape(n, f).astype(jnp.float32)
    if n_pad != n:
        x2 = jnp.pad(x2, ((0, n_pad - n), (0, 0)))

    w = weight.astype(jnp.float32)
    w_p = w if o_pad == o else jnp.pad(w, ((0, 0), (0, o_pad - o)))

    bias_p = bias.astype(jnp.float32)
    if o_pad != o:
        bias_p = jnp.pad(bias_p, (0, o_pad - o))
    bias_p = bias_p.reshape(1, o_pad)

    cent = centroids_w.reshape(c, k, v).astype(jnp.float32)        # (C, K, V)
    lut = jnp.einsum("ckv,cvo->cko", cent, w.reshape(c, v, o))      # hoisted lut
    if o_pad != o:
        lut = jnp.pad(lut, ((0, 0), (0, 0), (0, o_pad - o)))
    lut_g = lut.reshape(cg, cb * k, o_pad)                          # row j*K + k
    centT_g = cent.transpose(0, 2, 1).reshape(cg, cb * v, k)        # row j*V + v

    kernel = functools.partial(_lut_linear_kernel, n_rows=n)

    out_p, loss_parts = pl.pallas_call(
        kernel,
        out_shape=(
            jax.ShapeDtypeStruct((n_pad, o_pad), jnp.float32),
            jax.ShapeDtypeStruct((nt, 8, 128), jnp.float32),
        ),
        grid_spec=pltpu.PrefetchScalarGridSpec(
            num_scalar_prefetch=0,
            grid=(nt, cg),
            in_specs=[
                pl.BlockSpec((tn, gv), lambda ni, gi: (ni, gi)),          # x
                pl.BlockSpec((gv, o_pad), lambda ni, gi: (gi, 0)),        # W
                pl.BlockSpec((1, gv, k), lambda ni, gi: (gi, 0, 0)),      # cent^T
                pl.BlockSpec((1, cb * k, o_pad), lambda ni, gi: (gi, 0, 0)),  # lut
                pl.BlockSpec((1, o_pad), lambda ni, gi: (0, 0)),          # bias
            ],
            out_specs=[
                pl.BlockSpec((tn, o_pad), lambda ni, gi: (ni, 0)),        # output
                pl.BlockSpec((1, 8, 128), lambda ni, gi: (ni, 0, 0)),     # loss parts
            ],
            scratch_shapes=[
                pltpu.VMEM((tn, o_pad), jnp.float32),    # quant accumulator
                pltpu.VMEM((tn, cb * k), jnp.float32),   # fused one-hot
            ],
        ),
        compiler_params=pltpu.CompilerParams(
            dimension_semantics=("parallel", "arbitrary"),
            vmem_limit_bytes=_vmem_limit_bytes(tn, gv, k, cb, o_pad),
        ),
    )(x2, w_p, centT_g, lut_g, bias_p)

    out = out_p[:n, :o]
    output = out.reshape(b, o) if squeeze_seq else out.reshape(b, s, o)
    lut_loss = 2.0 * jnp.sum(loss_parts[:, 0, 0]) / float(n * o)
    return output, lut_loss


def _reference_forward(x, weight, centroids_w, bias, *, vec_len, ncentroids):
    """Pure-JAX reference mirroring the PyTorch forward."""
    if x.ndim == 2:
        b, f = x.shape
        s = 1
    else:
        b, s, f = x.shape
    o = weight.shape[1]
    v, k = vec_len, ncentroids
    c = f // v
    n = b * s
    xf = x.reshape(n, c, v).transpose(1, 0, 2)             # (C, N, V)
    wf = weight.reshape(c, v, o)                           # (C, V, O)
    cw = centroids_w.reshape(c, k, v)                      # (C, K, V)
    soft = jnp.einsum("cnv,cvo->no", xf, wf)
    dist = jnp.max(jnp.abs(xf[:, :, None, :] - cw[:, None, :, :]), axis=-1)
    idx = jnp.argmin(dist, axis=-1)
    oh = jax.nn.one_hot(idx, k, dtype=jnp.float32)
    lut = jnp.einsum("ckv,cvo->cko", cw, wf)
    quant = jnp.einsum("cnk,cko->no", oh, lut)
    loss = 2.0 * jnp.mean((quant - soft) ** 2)
    out = quant.reshape(b, s, o) + bias if x.ndim == 3 else quant.reshape(b, o) + bias
    return out, loss


if __name__ == "__main__":
    batch, seq_len = 2, 8
    in_features, out_features = 32, 32
    vec_len, ncentroids = 16, 16          # -> ncodebooks = 2

    key = jax.random.PRNGKey(0)
    kx, kw, kc = jax.random.split(key, 3)

    ncodebooks = in_features // vec_len
    bound = (6.0 / in_features) ** 0.5
    weight = jax.random.uniform(kw, (in_features, out_features),
                                jnp.float32, -bound, bound)
    centroids_w = jax.random.normal(kc, (ncodebooks, ncentroids * vec_len), jnp.float32)
    bias = jnp.zeros((out_features,), jnp.float32)

    x = jax.random.normal(kx, (batch, seq_len, in_features), jnp.float32)

    out, lut_loss = lut_linear_forward(
        x, weight, centroids_w, bias, vec_len=vec_len, ncentroids=ncentroids)
    out = jax.block_until_ready(out)
    lut_loss = jax.block_until_ready(lut_loss)

    ref_out, ref_loss = _reference_forward(
        x, weight, centroids_w, bias, vec_len=vec_len, ncentroids=ncentroids)

    assert out.shape == (batch, seq_len, out_features)
    assert jnp.allclose(out, ref_out, atol=1e-4, rtol=1e-4)
    assert jnp.allclose(lut_loss, ref_loss, atol=1e-4, rtol=1e-4)

    # Also exercise the 2-D input path (N padding + row-masked loss).
    x2d = jax.random.normal(kx, (batch, in_features), jnp.float32)
    out2, loss2 = lut_linear_forward(
        x2d, weight, centroids_w, bias, vec_len=vec_len, ncentroids=ncentroids)
    out2 = jax.block_until_ready(out2)
    ref_out2, ref_loss2 = _reference_forward(
        x2d, weight, centroids_w, bias, vec_len=vec_len, ncentroids=ncentroids)
    assert out2.shape == (batch, out_features)
    assert jnp.allclose(out2, ref_out2, atol=1e-4, rtol=1e-4)
    assert jnp.allclose(loss2, ref_loss2, atol=1e-4, rtol=1e-4)

    print("KERNEL_OK")
</pallas_src>

<mosaic_0001>
module attributes {stable_mosaic.version = 11 : i64} {
  func.func @_lut_linear_kernel(%arg0: i32, %arg1: i32, %arg2: memref<16x32xf32, #tpu.memory_space<vmem>>, %arg3: memref<32x128xf32, #tpu.memory_space<vmem>>, %arg4: memref<1x32x16xf32, #tpu.memory_space<vmem>>, %arg5: memref<1x32x128xf32, #tpu.memory_space<vmem>>, %arg6: memref<1x128xf32, #tpu.memory_space<vmem>>, %arg7: memref<16x128xf32, #tpu.memory_space<vmem>>, %arg8: memref<1x8x128xf32, #tpu.memory_space<vmem>>, %arg9: memref<16x128xf32, #tpu.memory_space<vmem>>, %arg10: memref<16x32xf32, #tpu.memory_space<vmem>>) attributes {dimension_semantics = [#tpu.dimension_semantics<parallel>, #tpu.dimension_semantics<arbitrary>], iteration_bounds = array<i64: 1, 1>, scalar_prefetch = 0 : i64, scratch_operands = 2 : i64, tpu.core_type = #tpu.core_type<tc>, window_params = [{transform_indices = @transform_0, window_bounds = array<i64: 16, 32>}, {transform_indices = @transform_1, window_bounds = array<i64: 32, 128>}, {transform_indices = @transform_2, window_bounds = array<i64: 1, 32, 16>}, {transform_indices = @transform_3, window_bounds = array<i64: 1, 32, 128>}, {pipeline_mode = #tpu.pipeline_mode<synchronous>, transform_indices = @transform_4, window_bounds = array<i64: 1, 128>}, {transform_indices = @transform_5, window_bounds = array<i64: 16, 128>}, {transform_indices = @transform_6, window_bounds = array<i64: 1, 8, 128>}]} {
    %c0_i32 = arith.constant 0 : i32
    %0 = arith.cmpi eq, %arg1, %c0_i32 : i32
    %1 = arith.extui %0 : i1 to i32
    %c0_i32_0 = arith.constant 0 : i32
    %2 = arith.cmpi ne, %1, %c0_i32_0 : i32
    scf.if %2 {
      %cst_26 = arith.constant 0.000000e+00 : f32
      %258 = vector.broadcast %cst_26 : f32 to vector<16x128xf32>
      %c0_27 = arith.constant 0 : index
      %c0_28 = arith.constant 0 : index
      %259 = vector.load %arg7[%c0_27, %c0_28] : memref<16x128xf32, #tpu.memory_space<vmem>>, vector<16x128xf32>
      tpu.vector_store %arg7[%c0_27, %c0_28], %258 {strides = array<i32>} : memref<16x128xf32, #tpu.memory_space<vmem>>, vector<16x128xf32>,
      %cst_29 = arith.constant 0.000000e+00 : f32
      %260 = vector.broadcast %cst_29 : f32 to vector<16x128xf32>
      %c0_30 = arith.constant 0 : index
      %c0_31 = arith.constant 0 : index
      %261 = vector.load %arg9[%c0_30, %c0_31] : memref<16x128xf32, #tpu.memory_space<vmem>>, vector<16x128xf32>
      tpu.vector_store %arg9[%c0_30, %c0_31], %260 {strides = array<i32>} : memref<16x128xf32, #tpu.memory_space<vmem>>, vector<16x128xf32>,
    } else {
    }
    %c0 = arith.constant 0 : index
    %c0_1 = arith.constant 0 : index
    %3 = vector.load %arg2[%c0, %c0_1] : memref<16x32xf32, #tpu.memory_space<vmem>>, vector<16x32xf32>
    %c0_2 = arith.constant 0 : index
    %c0_3 = arith.constant 0 : index
    %c0_4 = arith.constant 0 : index
    %4 = vector.load %arg4[%c0_2, %c0_3, %c0_4] : memref<1x32x16xf32, #tpu.memory_space<vmem>>, vector<1x32x16xf32>
    %5 = vector.shape_cast %4 : vector<1x32x16xf32> to vector<32x16xf32>
    %c0_5 = arith.constant 0 : index
    %c0_6 = arith.constant 0 : index
    %6 = vector.load %arg7[%c0_5, %c0_6] : memref<16x128xf32, #tpu.memory_space<vmem>>, vector<16x128xf32>
    %c0_7 = arith.constant 0 : index
    %c0_8 = arith.constant 0 : index
    %7 = vector.load %arg3[%c0_7, %c0_8] : memref<32x128xf32, #tpu.memory_space<vmem>>, vector<32x128xf32>
    %cst = arith.constant dense<0.000000e+00> : vector<16x128xf32>
    %8 = tpu.matmul %3, %7, %cst {dimension_numbers = #tpu.dot_dimension_numbers<[1], [0], [0], [1], [0, 0, 1, 1], [], []>} : vector<16x32xf32>, vector<32x128xf32>, vector<16x128xf32> -> vector<16x128xf32>
    %9 = arith.addf %6, %8 : vector<16x128xf32>
    %c0_9 = arith.constant 0 : index
    %c0_10 = arith.constant 0 : index
    %10 = vector.load %arg7[%c0_9, %c0_10] : memref<16x128xf32, #tpu.memory_space<vmem>>, vector<16x128xf32>
    tpu.vector_store %arg7[%c0_9, %c0_10], %9 {strides = array<i32>} : memref<16x128xf32, #tpu.memory_space<vmem>>, vector<16x128xf32>,
    %11 = tpu.iota {dimensions = array<i32: 1>} : vector<16x16xi32>
    %12 = vector.extract_strided_slice %3 {offsets = [0, 0], sizes = [16, 1], strides = [1, 1]} : vector<16x32xf32> to vector<16x1xf32>
    %13 = vector.extract_strided_slice %5 {offsets = [0, 0], sizes = [1, 16], strides = [1, 1]} : vector<32x16xf32> to vector<1x16xf32>
    %14 = vector.broadcast %12 : vector<16x1xf32> to vector<16x16xf32>
    %15 = vector.broadcast %13 : vector<1x16xf32> to vector<16x16xf32>
    %16 = arith.subf %14, %15 : vector<16x16xf32>
    %17 = math.absf %16 : vector<16x16xf32>
    %18 = vector.extract_strided_slice %3 {offsets = [0, 1], sizes = [16, 1], strides = [1, 1]} : vector<16x32xf32> to vector<16x1xf32>
    %19 = vector.extract_strided_slice %5 {offsets = [1, 0], sizes = [1, 16], strides = [1, 1]} : vector<32x16xf32> to vector<1x16xf32>
    %20 = vector.broadcast %18 : vector<16x1xf32> to vector<16x16xf32>
    %21 = vector.broadcast %19 : vector<1x16xf32> to vector<16x16xf32>
    %22 = arith.subf %20, %21 : vector<16x16xf32>
    %23 = math.absf %22 : vector<16x16xf32>
    %24 = arith.maximumf %17, %23 : vector<16x16xf32>
    %25 = vector.extract_strided_slice %3 {offsets = [0, 2], sizes = [16, 1], strides = [1, 1]} : vector<16x32xf32> to vector<16x1xf32>
    %26 = vector.extract_strided_slice %5 {offsets = [2, 0], sizes = [1, 16], strides = [1, 1]} : vector<32x16xf32> to vector<1x16xf32>
    %27 = vector.broadcast %25 : vector<16x1xf32> to vector<16x16xf32>
    %28 = vector.broadcast %26 : vector<1x16xf32> to vector<16x16xf32>
    %29 = arith.subf %27, %28 : vector<16x16xf32>
    %30 = math.absf %29 : vector<16x16xf32>
    %31 = arith.maximumf %24, %30 : vector<16x16xf32>
    %32 = vector.extract_strided_slice %3 {offsets = [0, 3], sizes = [16, 1], strides = [1, 1]} : vector<16x32xf32> to vector<16x1xf32>
    %33 = vector.extract_strided_slice %5 {offsets = [3, 0], sizes = [1, 16], strides = [1, 1]} : vector<32x16xf32> to vector<1x16xf32>
    %34 = vector.broadcast %32 : vector<16x1xf32> to vector<16x16xf32>
    %35 = vector.broadcast %33 : vector<1x16xf32> to vector<16x16xf32>
    %36 = arith.subf %34, %35 : vector<16x16xf32>
    %37 = math.absf %36 : vector<16x16xf32>
    %38 = arith.maximumf %31, %37 : vector<16x16xf32>
    %39 = vector.extract_strided_slice %3 {offsets = [0, 4], sizes = [16, 1], strides = [1, 1]} : vector<16x32xf32> to vector<16x1xf32>
    %40 = vector.extract_strided_slice %5 {offsets = [4, 0], sizes = [1, 16], strides = [1, 1]} : vector<32x16xf32> to vector<1x16xf32>
    %41 = vector.broadcast %39 : vector<16x1xf32> to vector<16x16xf32>
    %42 = vector.broadcast %40 : vector<1x16xf32> to vector<16x16xf32>
    %43 = arith.subf %41, %42 : vector<16x16xf32>
    %44 = math.absf %43 : vector<16x16xf32>
    %45 = arith.maximumf %38, %44 : vector<16x16xf32>
    %46 = vector.extract_strided_slice %3 {offsets = [0, 5], sizes = [16, 1], strides = [1, 1]} : vector<16x32xf32> to vector<16x1xf32>
    %47 = vector.extract_strided_slice %5 {offsets = [5, 0], sizes = [1, 16], strides = [1, 1]} : vector<32x16xf32> to vector<1x16xf32>
    %48 = vector.broadcast %46 : vector<16x1xf32> to vector<16x16xf32>
    %49 = vector.broadcast %47 : vector<1x16xf32> to vector<16x16xf32>
    %50 = arith.subf %48, %49 : vector<16x16xf32>
    %51 = math.absf %50 : vector<16x16xf32>
    %52 = arith.maximumf %45, %51 : vector<16x16xf32>
    %53 = vector.extract_strided_slice %3 {offsets = [0, 6], sizes = [16, 1], strides = [1, 1]} : vector<16x32xf32> to vector<16x1xf32>
    %54 = vector.extract_strided_slice %5 {offsets = [6, 0], sizes = [1, 16], strides = [1, 1]} : vector<32x16xf32> to vector<1x16xf32>
    %55 = vector.broadcast %53 : vector<16x1xf32> to vector<16x16xf32>
    %56 = vector.broadcast %54 : vector<1x16xf32> to vector<16x16xf32>
    %57 = arith.subf %55, %56 : vector<16x16xf32>
    %58 = math.absf %57 : vector<16x16xf32>
    %59 = arith.maximumf %52, %58 : vector<16x16xf32>
    %60 = vector.extract_strided_slice %3 {offsets = [0, 7], sizes = [16, 1], strides = [1, 1]} : vector<16x32xf32> to vector<16x1xf32>
    %61 = vector.extract_strided_slice %5 {offsets = [7, 0], sizes = [1, 16], strides = [1, 1]} : vector<32x16xf32> to vector<1x16xf32>
    %62 = vector.broadcast %60 : vector<16x1xf32> to vector<16x16xf32>
    %63 = vector.broadcast %61 : vector<1x16xf32> to vector<16x16xf32>
    %64 = arith.subf %62, %63 : vector<16x16xf32>
    %65 = math.absf %64 : vector<16x16xf32>
    %66 = arith.maximumf %59, %65 : vector<16x16xf32>
    %67 = vector.extract_strided_slice %3 {offsets = [0, 8], sizes = [16, 1], strides = [1, 1]} : vector<16x32xf32> to vector<16x1xf32>
    %68 = vector.extract_strided_slice %5 {offsets = [8, 0], sizes = [1, 16], strides = [1, 1]} : vector<32x16xf32> to vector<1x16xf32>
    %69 = vector.broadcast %67 : vector<16x1xf32> to vector<16x16xf32>
    %70 = vector.broadcast %68 : vector<1x16xf32> to vector<16x16xf32>
    %71 = arith.subf %69, %70 : vector<16x16xf32>
    %72 = math.absf %71 : vector<16x16xf32>
    %73 = arith.maximumf %66, %72 : vector<16x16xf32>
    %74 = vector.extract_strided_slice %3 {offsets = [0, 9], sizes = [16, 1], strides = [1, 1]} : vector<16x32xf32> to vector<16x1xf32>
    %75 = vector.extract_strided_slice %5 {offsets = [9, 0], sizes = [1, 16], strides = [1, 1]} : vector<32x16xf32> to vector<1x16xf32>
    %76 = vector.broadcast %74 : vector<16x1xf32> to vector<16x16xf32>
    %77 = vector.broadcast %75 : vector<1x16xf32> to vector<16x16xf32>
    %78 = arith.subf %76, %77 : vector<16x16xf32>
    %79 = math.absf %78 : vector<16x16xf32>
    %80 = arith.maximumf %73, %79 : vector<16x16xf32>
    %81 = vector.extract_strided_slice %3 {offsets = [0, 10], sizes = [16, 1], strides = [1, 1]} : vector<16x32xf32> to vector<16x1xf32>
    %82 = vector.extract_strided_slice %5 {offsets = [10, 0], sizes = [1, 16], strides = [1, 1]} : vector<32x16xf32> to vector<1x16xf32>
    %83 = vector.broadcast %81 : vector<16x1xf32> to vector<16x16xf32>
    %84 = vector.broadcast %82 : vector<1x16xf32> to vector<16x16xf32>
    %85 = arith.subf %83, %84 : vector<16x16xf32>
    %86 = math.absf %85 : vector<16x16xf32>
    %87 = arith.maximumf %80, %86 : vector<16x16xf32>
    %88 = vector.extract_strided_slice %3 {offsets = [0, 11], sizes = [16, 1], strides = [1, 1]} : vector<16x32xf32> to vector<16x1xf32>
    %89 = vector.extract_strided_slice %5 {offsets = [11, 0], sizes = [1, 16], strides = [1, 1]} : vector<32x16xf32> to vector<1x16xf32>
    %90 = vector.broadcast %88 : vector<16x1xf32> to vector<16x16xf32>
    %91 = vector.broadcast %89 : vector<1x16xf32> to vector<16x16xf32>
    %92 = arith.subf %90, %91 : vector<16x16xf32>
    %93 = math.absf %92 : vector<16x16xf32>
    %94 = arith.maximumf %87, %93 : vector<16x16xf32>
    %95 = vector.extract_strided_slice %3 {offsets = [0, 12], sizes = [16, 1], strides = [1, 1]} : vector<16x32xf32> to vector<16x1xf32>
    %96 = vector.extract_strided_slice %5 {offsets = [12, 0], sizes = [1, 16], strides = [1, 1]} : vector<32x16xf32> to vector<1x16xf32>
    %97 = vector.broadcast %95 : vector<16x1xf32> to vector<16x16xf32>
    %98 = vector.broadcast %96 : vector<1x16xf32> to vector<16x16xf32>
    %99 = arith.subf %97, %98 : vector<16x16xf32>
    %100 = math.absf %99 : vector<16x16xf32>
    %101 = arith.maximumf %94, %100 : vector<16x16xf32>
    %102 = vector.extract_strided_slice %3 {offsets = [0, 13], sizes = [16, 1], strides = [1, 1]} : vector<16x32xf32> to vector<16x1xf32>
    %103 = vector.extract_strided_slice %5 {offsets = [13, 0], sizes = [1, 16], strides = [1, 1]} : vector<32x16xf32> to vector<1x16xf32>
    %104 = vector.broadcast %102 : vector<16x1xf32> to vector<16x16xf32>
    %105 = vector.broadcast %103 : vector<1x16xf32> to vector<16x16xf32>
    %106 = arith.subf %104, %105 : vector<16x16xf32>
    %107 = math.absf %106 : vector<16x16xf32>
    %108 = arith.maximumf %101, %107 : vector<16x16xf32>
    %109 = vector.extract_strided_slice %3 {offsets = [0, 14], sizes = [16, 1], strides = [1, 1]} : vector<16x32xf32> to vector<16x1xf32>
    %110 = vector.extract_strided_slice %5 {offsets = [14, 0], sizes = [1, 16], strides = [1, 1]} : vector<32x16xf32> to vector<1x16xf32>
    %111 = vector.broadcast %109 : vector<16x1xf32> to vector<16x16xf32>
    %112 = vector.broadcast %110 : vector<1x16xf32> to vector<16x16xf32>
    %113 = arith.subf %111, %112 : vector<16x16xf32>
    %114 = math.absf %113 : vector<16x16xf32>
    %115 = arith.maximumf %108, %114 : vector<16x16xf32>
    %116 = vector.extract_strided_slice %3 {offsets = [0, 15], sizes = [16, 1], strides = [1, 1]} : vector<16x32xf32> to vector<16x1xf32>
    %117 = vector.extract_strided_slice %5 {offsets = [15, 0], sizes = [1, 16], strides = [1, 1]} : vector<32x16xf32> to vector<1x16xf32>
    %118 = vector.broadcast %116 : vector<16x1xf32> to vector<16x16xf32>
    %119 = vector.broadcast %117 : vector<1x16xf32> to vector<16x16xf32>
    %120 = arith.subf %118, %119 : vector<16x16xf32>
    %121 = math.absf %120 : vector<16x16xf32>
    %122 = arith.maximumf %115, %121 : vector<16x16xf32>
    %123 = tpu.reduce_index %122 {axis = 1 : i32, kind = #tpu.reduction_kind<arg_min>} : vector<16x16xf32> -> vector<16xi32>
    %124 = vector.shape_cast %123 : vector<16xi32> to vector<16x1xi32>
    %125 = vector.broadcast %124 : vector<16x1xi32> to vector<16x16xi32>
    %126 = arith.cmpi eq, %125, %11 : vector<16x16xi32>
    %127 = arith.extui %126 : vector<16x16xi1> to vector<16x16xi32>
    %128 = arith.sitofp %127 : vector<16x16xi32> to vector<16x16xf32>
    %c0_11 = arith.constant 0 : index
    %c0_12 = arith.constant 0 : index
    %129 = vector.load %arg10[%c0_11, %c0_12] : memref<16x32xf32, #tpu.memory_space<vmem>>, vector<16x16xf32>
    tpu.vector_store %arg10[%c0_11, %c0_12], %128 {strides = array<i32>} : memref<16x32xf32, #tpu.memory_space<vmem>>, vector<16x16xf32>,
    %130 = vector.extract_strided_slice %3 {offsets = [0, 16], sizes = [16, 1], strides = [1, 1]} : vector<16x32xf32> to vector<16x1xf32>
    %131 = vector.extract_strided_slice %5 {offsets = [16, 0], sizes = [1, 16], strides = [1, 1]} : vector<32x16xf32> to vector<1x16xf32>
    %132 = vector.broadcast %130 : vector<16x1xf32> to vector<16x16xf32>
    %133 = vector.broadcast %131 : vector<1x16xf32> to vector<16x16xf32>
    %134 = arith.subf %132, %133 : vector<16x16xf32>
    %135 = math.absf %134 : vector<16x16xf32>
    %136 = vector.extract_strided_slice %3 {offsets = [0, 17], sizes = [16, 1], strides = [1, 1]} : vector<16x32xf32> to vector<16x1xf32>
    %137 = vector.extract_strided_slice %5 {offsets = [17, 0], sizes = [1, 16], strides = [1, 1]} : vector<32x16xf32> to vector<1x16xf32>
    %138 = vector.broadcast %136 : vector<16x1xf32> to vector<16x16xf32>
    %139 = vector.broadcast %137 : vector<1x16xf32> to vector<16x16xf32>
    %140 = arith.subf %138, %139 : vector<16x16xf32>
    %141 = math.absf %140 : vector<16x16xf32>
    %142 = arith.maximumf %135, %141 : vector<16x16xf32>
    %143 = vector.extract_strided_slice %3 {offsets = [0, 18], sizes = [16, 1], strides = [1, 1]} : vector<16x32xf32> to vector<16x1xf32>
    %144 = vector.extract_strided_slice %5 {offsets = [18, 0], sizes = [1, 16], strides = [1, 1]} : vector<32x16xf32> to vector<1x16xf32>
    %145 = vector.broadcast %143 : vector<16x1xf32> to vector<16x16xf32>
    %146 = vector.broadcast %144 : vector<1x16xf32> to vector<16x16xf32>
    %147 = arith.subf %145, %146 : vector<16x16xf32>
    %148 = math.absf %147 : vector<16x16xf32>
    %149 = arith.maximumf %142, %148 : vector<16x16xf32>
    %150 = vector.extract_strided_slice %3 {offsets = [0, 19], sizes = [16, 1], strides = [1, 1]} : vector<16x32xf32> to vector<16x1xf32>
    %151 = vector.extract_strided_slice %5 {offsets = [19, 0], sizes = [1, 16], strides = [1, 1]} : vector<32x16xf32> to vector<1x16xf32>
    %152 = vector.broadcast %150 : vector<16x1xf32> to vector<16x16xf32>
    %153 = vector.broadcast %151 : vector<1x16xf32> to vector<16x16xf32>
    %154 = arith.subf %152, %153 : vector<16x16xf32>
    %155 = math.absf %154 : vector<16x16xf32>
    %156 = arith.maximumf %149, %155 : vector<16x16xf32>
    %157 = vector.extract_strided_slice %3 {offsets = [0, 20], sizes = [16, 1], strides = [1, 1]} : vector<16x32xf32> to vector<16x1xf32>
    %158 = vector.extract_strided_slice %5 {offsets = [20, 0], sizes = [1, 16], strides = [1, 1]} : vector<32x16xf32> to vector<1x16xf32>
    %159 = vector.broadcast %157 : vector<16x1xf32> to vector<16x16xf32>
    %160 = vector.broadcast %158 : vector<1x16xf32> to vector<16x16xf32>
    %161 = arith.subf %159, %160 : vector<16x16xf32>
    %162 = math.absf %161 : vector<16x16xf32>
    %163 = arith.maximumf %156, %162 : vector<16x16xf32>
    %164 = vector.extract_strided_slice %3 {offsets = [0, 21], sizes = [16, 1], strides = [1, 1]} : vector<16x32xf32> to vector<16x1xf32>
    %165 = vector.extract_strided_slice %5 {offsets = [21, 0], sizes = [1, 16], strides = [1, 1]} : vector<32x16xf32> to vector<1x16xf32>
    %166 = vector.broadcast %164 : vector<16x1xf32> to vector<16x16xf32>
    %167 = vector.broadcast %165 : vector<1x16xf32> to vector<16x16xf32>
    %168 = arith.subf %166, %167 : vector<16x16xf32>
    %169 = math.absf %168 : vector<16x16xf32>
    %170 = arith.maximumf %163, %169 : vector<16x16xf32>
    %171 = vector.extract_strided_slice %3 {offsets = [0, 22], sizes = [16, 1], strides = [1, 1]} : vector<16x32xf32> to vector<16x1xf32>
    %172 = vector.extract_strided_slice %5 {offsets = [22, 0], sizes = [1, 16], strides = [1, 1]} : vector<32x16xf32> to vector<1x16xf32>
    %173 = vector.broadcast %171 : vector<16x1xf32> to vector<16x16xf32>
    %174 = vector.broadcast %172 : vector<1x16xf32> to vector<16x16xf32>
    %175 = arith.subf %173, %174 : vector<16x16xf32>
    %176 = math.absf %175 : vector<16x16xf32>
    %177 = arith.maximumf %170, %176 : vector<16x16xf32>
    %178 = vector.extract_strided_slice %3 {offsets = [0, 23], sizes = [16, 1], strides = [1, 1]} : vector<16x32xf32> to vector<16x1xf32>
    %179 = vector.extract_strided_slice %5 {offsets = [23, 0], sizes = [1, 16], strides = [1, 1]} : vector<32x16xf32> to vector<1x16xf32>
    %180 = vector.broadcast %178 : vector<16x1xf32> to vector<16x16xf32>
    %181 = vector.broadcast %179 : vector<1x16xf32> to vector<16x16xf32>
    %182 = arith.subf %180, %181 : vector<16x16xf32>
    %183 = math.absf %182 : vector<16x16xf32>
    %184 = arith.maximumf %177, %183 : vector<16x16xf32>
    %185 = vector.extract_strided_slice %3 {offsets = [0, 24], sizes = [16, 1], strides = [1, 1]} : vector<16x32xf32> to vector<16x1xf32>
    %186 = vector.extract_strided_slice %5 {offsets = [24, 0], sizes = [1, 16], strides = [1, 1]} : vector<32x16xf32> to vector<1x16xf32>
    %187 = vector.broadcast %185 : vector<16x1xf32> to vector<16x16xf32>
    %188 = vector.broadcast %186 : vector<1x16xf32> to vector<16x16xf32>
    %189 = arith.subf %187, %188 : vector<16x16xf32>
    %190 = math.absf %189 : vector<16x16xf32>
    %191 = arith.maximumf %184, %190 : vector<16x16xf32>
    %192 = vector.extract_strided_slice %3 {offsets = [0, 25], sizes = [16, 1], strides = [1, 1]} : vector<16x32xf32> to vector<16x1xf32>
    %193 = vector.extract_strided_slice %5 {offsets = [25, 0], sizes = [1, 16], strides = [1, 1]} : vector<32x16xf32> to vector<1x16xf32>
    %194 = vector.broadcast %192 : vector<16x1xf32> to vector<16x16xf32>
    %195 = vector.broadcast %193 : vector<1x16xf32> to vector<16x16xf32>
    %196 = arith.subf %194, %195 : vector<16x16xf32>
    %197 = math.absf %196 : vector<16x16xf32>
    %198 = arith.maximumf %191, %197 : vector<16x16xf32>
    %199 = vector.extract_strided_slice %3 {offsets = [0, 26], sizes = [16, 1], strides = [1, 1]} : vector<16x32xf32> to vector<16x1xf32>
    %200 = vector.extract_strided_slice %5 {offsets = [26, 0], sizes = [1, 16], strides = [1, 1]} : vector<32x16xf32> to vector<1x16xf32>
    %201 = vector.broadcast %199 : vector<16x1xf32> to vector<16x16xf32>
    %202 = vector.broadcast %200 : vector<1x16xf32> to vector<16x16xf32>
    %203 = arith.subf %201, %202 : vector<16x16xf32>
    %204 = math.absf %203 : vector<16x16xf32>
    %205 = arith.maximumf %198, %204 : vector<16x16xf32>
    %206 = vector.extract_strided_slice %3 {offsets = [0, 27], sizes = [16, 1], strides = [1, 1]} : vector<16x32xf32> to vector<16x1xf32>
    %207 = vector.extract_strided_slice %5 {offsets = [27, 0], sizes = [1, 16], strides = [1, 1]} : vector<32x16xf32> to vector<1x16xf32>
    %208 = vector.broadcast %206 : vector<16x1xf32> to vector<16x16xf32>
    %209 = vector.broadcast %207 : vector<1x16xf32> to vector<16x16xf32>
    %210 = arith.subf %208, %209 : vector<16x16xf32>
    %211 = math.absf %210 : vector<16x16xf32>
    %212 = arith.maximumf %205, %211 : vector<16x16xf32>
    %213 = vector.extract_strided_slice %3 {offsets = [0, 28], sizes = [16, 1], strides = [1, 1]} : vector<16x32xf32> to vector<16x1xf32>
    %214 = vector.extract_strided_slice %5 {offsets = [28, 0], sizes = [1, 16], strides = [1, 1]} : vector<32x16xf32> to vector<1x16xf32>
    %215 = vector.broadcast %213 : vector<16x1xf32> to vector<16x16xf32>
    %216 = vector.broadcast %214 : vector<1x16xf32> to vector<16x16xf32>
    %217 = arith.subf %215, %216 : vector<16x16xf32>
    %218 = math.absf %217 : vector<16x16xf32>
    %219 = arith.maximumf %212, %218 : vector<16x16xf32>
    %220 = vector.extract_strided_slice %3 {offsets = [0, 29], sizes = [16, 1], strides = [1, 1]} : vector<16x32xf32> to vector<16x1xf32>
    %221 = vector.extract_strided_slice %5 {offsets = [29, 0], sizes = [1, 16], strides = [1, 1]} : vector<32x16xf32> to vector<1x16xf32>
    %222 = vector.broadcast %220 : vector<16x1xf32> to vector<16x16xf32>
    %223 = vector.broadcast %221 : vector<1x16xf32> to vector<16x16xf32>
    %224 = arith.subf %222, %223 : vector<16x16xf32>
    %225 = math.absf %224 : vector<16x16xf32>
    %226 = arith.maximumf %219, %225 : vector<16x16xf32>
    %227 = vector.extract_strided_slice %3 {offsets = [0, 30], sizes = [16, 1], strides = [1, 1]} : vector<16x32xf32> to vector<16x1xf32>
    %228 = vector.extract_strided_slice %5 {offsets = [30, 0], sizes = [1, 16], strides = [1, 1]} : vector<32x16xf32> to vector<1x16xf32>
    %229 = vector.broadcast %227 : vector<16x1xf32> to vector<16x16xf32>
    %230 = vector.broadcast %228 : vector<1x16xf32> to vector<16x16xf32>
    %231 = arith.subf %229, %230 : vector<16x16xf32>
    %232 = math.absf %231 : vector<16x16xf32>
    %233 = arith.maximumf %226, %232 : vector<16x16xf32>
    %234 = vector.extract_strided_slice %3 {offsets = [0, 31], sizes = [16, 1], strides = [1, 1]} : vector<16x32xf32> to vector<16x1xf32>
    %235 = vector.extract_strided_slice %5 {offsets = [31, 0], sizes = [1, 16], strides = [1, 1]} : vector<32x16xf32> to vector<1x16xf32>
    %236 = vector.broadcast %234 : vector<16x1xf32> to vector<16x16xf32>
    %237 = vector.broadcast %235 : vector<1x16xf32> to vector<16x16xf32>
    %238 = arith.subf %236, %237 : vector<16x16xf32>
    %239 = math.absf %238 : vector<16x16xf32>
    %240 = arith.maximumf %233, %239 : vector<16x16xf32>
    %241 = tpu.reduce_index %240 {axis = 1 : i32, kind = #tpu.reduction_kind<arg_min>} : vector<16x16xf32> -> vector<16xi32>
    %242 = vector.shape_cast %241 : vector<16xi32> to vector<16x1xi32>
    %243 = vector.broadcast %242 : vector<16x1xi32> to vector<16x16xi32>
    %244 = arith.cmpi eq, %243, %11 : vector<16x16xi32>
    %245 = arith.extui %244 : vector<16x16xi1> to vector<16x16xi32>
    %246 = arith.sitofp %245 : vector<16x16xi32> to vector<16x16xf32>
    %c0_13 = arith.constant 0 : index
    %c16 = arith.constant 16 : index
    %247 = vector.load %arg10[%c0_13, %c16] : memref<16x32xf32, #tpu.memory_space<vmem>>, vector<16x16xf32>
    tpu.vector_store %arg10[%c0_13, %c16], %246 {strides = array<i32>} : memref<16x32xf32, #tpu.memory_space<vmem>>, vector<16x16xf32>,
    %c0_14 = arith.constant 0 : index
    %c0_15 = arith.constant 0 : index
    %248 = vector.load %arg9[%c0_14, %c0_15] : memref<16x128xf32, #tpu.memory_space<vmem>>, vector<16x128xf32>
    %c0_16 = arith.constant 0 : index
    %c0_17 = arith.constant 0 : index
    %249 = vector.load %arg10[%c0_16, %c0_17] : memref<16x32xf32, #tpu.memory_space<vmem>>, vector<16x32xf32>
    %c0_18 = arith.constant 0 : index
    %c0_19 = arith.constant 0 : index
    %c0_20 = arith.constant 0 : index
    %250 = vector.load %arg5[%c0_18, %c0_19, %c0_20] : memref<1x32x128xf32, #tpu.memory_space<vmem>>, vector<1x32x128xf32>
    %251 = vector.shape_cast %250 : vector<1x32x128xf32> to vector<32x128xf32>
    %cst_21 = arith.constant dense<0.000000e+00> : vector<16x128xf32>
    %252 = tpu.matmul %249, %251, %cst_21 {dimension_numbers = #tpu.dot_dimension_numbers<[1], [0], [0], [1], [0, 0, 1, 1], [], []>} : vector<16x32xf32>, vector<32x128xf32>, vector<16x128xf32> -> vector<16x128xf32>
    %253 = arith.addf %248, %252 : vector<16x128xf32>
    %c0_22 = arith.constant 0 : index
    %c0_23 = arith.constant 0 : index
    %254 = vector.load %arg9[%c0_22, %c0_23] : memref<16x128xf32, #tpu.memory_space<vmem>>, vector<16x128xf32>
    tpu.vector_store %arg9[%c0_22, %c0_23], %253 {strides = array<i32>} : memref<16x128xf32, #tpu.memory_space<vmem>>, vector<16x128xf32>,
    %c0_i32_24 = arith.constant 0 : i32
    %255 = arith.cmpi eq, %arg1, %c0_i32_24 : i32
    %256 = arith.extui %255 : i1 to i32
    %c0_i32_25 = arith.constant 0 : i32
    %257 = arith.cmpi ne, %256, %c0_i32_25 : i32
    scf.if %257 {
      %c0_26 = arith.constant 0 : index
      %c0_27 = arith.constant 0 : index
      %258 = vector.load %arg7[%c0_26, %c0_27] : memref<16x128xf32, #tpu.memory_space<vmem>>, vector<16x128xf32>
      %c0_28 = arith.constant 0 : index
      %c0_29 = arith.constant 0 : index
      %259 = vector.load %arg9[%c0_28, %c0_29] : memref<16x128xf32, #tpu.memory_space<vmem>>, vector<16x128xf32>
      %260 = tpu.iota {dimensions = array<i32: 0>} : vector<16x1xi32>
      %c16_i32 = arith.constant 16 : i32
      %261 = arith.muli %arg0, %c16_i32 : i32
      %262 = vector.broadcast %261 : i32 to vector<16x1xi32>
      %263 = arith.addi %260, %262 : vector<16x1xi32>
      %c16_i32_30 = arith.constant 16 : i32
      %264 = vector.broadcast %c16_i32_30 : i32 to vector<16x1xi32>
      %265 = arith.cmpi slt, %263, %264 : vector<16x1xi32>
      %266 = arith.extui %265 : vector<16x1xi1> to vector<16x1xi32>
      %267 = arith.sitofp %266 : vector<16x1xi32> to vector<16x1xf32>
      %268 = arith.subf %259, %258 : vector<16x128xf32>
      %269 = arith.subf %259, %258 : vector<16x128xf32>
      %270 = arith.mulf %268, %269 : vector<16x128xf32>
      %271 = vector.broadcast %267 : vector<16x1xf32> to vector<16x128xf32>
      %272 = arith.mulf %270, %271 : vector<16x128xf32>
      %273 = vector.shape_cast %272 : vector<16x128xf32> to vector<1x16x128xf32>
      %cst_31 = arith.constant dense<0.000000e+00> : vector<1xf32>
      %274 = vector.multi_reduction <add>, %273, %cst_31 [1, 2] : vector<1x16x128xf32> to vector<1xf32>
      %275 = vector.shape_cast %274 : vector<1xf32> to vector<1x1x1xf32>
      %276 = vector.extract %275[0, 0, 0] : f32 from vector<1x1x1xf32>
      %277 = vector.broadcast %276 : f32 to vector<1x8x128xf32>
      %c0_32 = arith.constant 0 : index
      %c0_33 = arith.constant 0 : index
      %c0_34 = arith.constant 0 : index
      %278 = vector.load %arg8[%c0_32, %c0_33, %c0_34] : memref<1x8x128xf32, #tpu.memory_space<vmem>>, vector<1x8x128xf32>
      tpu.vector_store %arg8[%c0_32, %c0_33, %c0_34], %277 {strides = array<i32>} : memref<1x8x128xf32, #tpu.memory_space<vmem>>, vector<1x8x128xf32>,
      %c0_35 = arith.constant 0 : index
      %c0_36 = arith.constant 0 : index
      %279 = vector.load %arg6[%c0_35, %c0_36] : memref<1x128xf32, #tpu.memory_space<vmem>>, vector<1x128xf32>
      %280 = vector.broadcast %279 : vector<1x128xf32> to vector<16x128xf32>
      %281 = arith.addf %259, %280 : vector<16x128xf32>
      %c0_37 = arith.constant 0 : index
      %c0_38 = arith.constant 0 : index
      %282 = vector.load %arg7[%c0_37, %c0_38] : memref<16x128xf32, #tpu.memory_space<vmem>>, vector<16x128xf32>
      tpu.vector_store %arg7[%c0_37, %c0_38], %281 {strides = array<i32>} : memref<16x128xf32, #tpu.memory_space<vmem>>, vector<16x128xf32>,
    } else {
    }
    return
  }
  func.func @transform_0(%arg0: i32, %arg1: i32) -> (i32, i32) {
    %c0_i32 = arith.constant 0 : i32
    return %arg0, %arg1 : i32, i32
  }
  func.func @transform_1(%arg0: i32, %arg1: i32) -> (i32, i32) {
    %c0_i32 = arith.constant 0 : i32
    %c0_i32_0 = arith.constant 0 : i32
    return %arg1, %c0_i32 : i32, i32
  }
  func.func @transform_2(%arg0: i32, %arg1: i32) -> (i32, i32, i32) {
    %c0_i32 = arith.constant 0 : i32
    %c0_i32_0 = arith.constant 0 : i32
    %c0_i32_1 = arith.constant 0 : i32
    return %arg1, %c0_i32, %c0_i32_0 : i32, i32, i32
  }
  func.func @transform_3(%arg0: i32, %arg1: i32) -> (i32, i32, i32) {
    %c0_i32 = arith.constant 0 : i32
    %c0_i32_0 = arith.constant 0 : i32
    %c0_i32_1 = arith.constant 0 : i32
    return %arg1, %c0_i32, %c0_i32_0 : i32, i32, i32
  }
  func.func @transform_4(%arg0: i32, %arg1: i32) -> (i32, i32) {
    %c0_i32 = arith.constant 0 : i32
    %c0_i32_0 = arith.constant 0 : i32
    %c0_i32_1 = arith.constant 0 : i32
    return %c0_i32, %c0_i32_0 : i32, i32
  }
  func.func @transform_5(%arg0: i32, %arg1: i32) -> (i32, i32) {
    %c0_i32 = arith.constant 0 : i32
    %c0_i32_0 = arith.constant 0 : i32
    return %arg0, %c0_i32 : i32, i32
  }
  func.func @transform_6(%arg0: i32, %arg1: i32) -> (i32, i32, i32) {
    %c0_i32 = arith.constant 0 : i32
    %c0_i32_0 = arith.constant 0 : i32
    %c0_i32_1 = arith.constant 0 : i32
    return %arg0, %c0_i32, %c0_i32_0 : i32, i32, i32
  }
}

</mosaic_0001>

<llo_original>
// kernel: lut_linear_forward.1
$region0: #{lut_linear_forward.1}
  #allocation0 [shape = 'u32[]', space=smem, size = 0x4, offset = 0x4, fixed_abs, tag = 'smem constant byte address 0x4 - core index']
  #allocation1 [shape = 'u32[144,128]{1,0:T(1,128)}', space=vmem, size = 0x12000, scoped, tag = 'internal scratch']
  #allocation2 [shape = 'f32[16,128]{1,0:T(8,128)}', space=vmem, size = 0x2000, scoped, tag = 'scratch operand']
  #allocation3 [shape = 'f32[16,32]{1,0:T(8,128)}', space=vmem, size = 0x2000, scoped, tag = 'scratch operand']
  %s0 = inlined_call_operand.vmem [shape: f32[16,32], index: 0, kind: input, shape index: {}]
  %s1 = inlined_call_operand.vmem [shape: f32[32,128], index: 1, kind: input, shape index: {}]
  %s2 = inlined_call_operand.vmem [shape: f32[1,32,16], index: 2, kind: input, shape index: {}]
  %s3 = inlined_call_operand.vmem [shape: f32[1,32,128], index: 3, kind: input, shape index: {}]
  %s4 = inlined_call_operand.vmem [shape: f32[1,128], index: 4, kind: input, shape index: {}]
  %s5 = inlined_call_operand.vmem [shape: f32[16,128], index: 5, kind: output, shape index: {0}]
  %s6 = inlined_call_operand.vmem [shape: f32[1,8,128], index: 6, kind: output, shape index: {1}]
  %7 = xla_tuple %s5, %s6
  %s8 = sld [smem:[#allocation0]]
  $region46: #{lut_linear_forward.1} parent=0
    _
  %s10 = ssub.s32 1, %s8
  %s11 = scalar_select 0, %s10, %s8
  // Predicated region
  $region2: #{lut_linear_forward.1} parent=0 // pred_check
    _
  $region3: #{lut_linear_forward.1} parent=0 // pred_check_branch
    %13 = sbr.rel (0) target = $region5
  $region4: #{lut_linear_forward.1} parent=0 // pred_region
    _
  $region5: #{lut_linear_forward.1} parent=0 // pred_fallthru
    _
  // Predicated region
  $region6: #{lut_linear_forward.1} parent=0 // pred_check
    _
  $region7: #{lut_linear_forward.1} parent=0 // pred_check_branch
    %15 = sbr.rel (0) target = $region9
  $region8: #{lut_linear_forward.1} parent=0 // pred_region
    _
  $region9: #{lut_linear_forward.1} parent=0 // pred_fallthru
    _
  // Predicated region
  $region10: #{lut_linear_forward.1} parent=0 // pred_check
    _
  $region11: #{lut_linear_forward.1} parent=0 // pred_check_branch
    %17 = sbr.rel (0) target = $region13
  $region12: #{lut_linear_forward.1} parent=0 // pred_region
    _
  $region13: #{lut_linear_forward.1} parent=0 // pred_fallthru
    _
  // Predicated region
  $region14: #{lut_linear_forward.1} parent=0 // pred_check
    _
  $region15: #{lut_linear_forward.1} parent=0 // pred_check_branch
    %19 = sbr.rel (0) target = $region17
  $region16: #{lut_linear_forward.1} parent=0 // pred_region
    _
  $region17: #{lut_linear_forward.1} parent=0 // pred_fallthru
    _
  // Predicated region
  $region18: #{lut_linear_forward.1} parent=0 // pred_check
    _
  $region19: #{lut_linear_forward.1} parent=0 // pred_check_branch
    %21 = sbr.rel (0) target = $region21
  $region20: #{lut_linear_forward.1} parent=0 // pred_region
    _
  $region21: #{lut_linear_forward.1} parent=0 // pred_fallthru
    _
  %p22 = scmp.eq.s32.totalorder 0, 0
  // Predicated region
  $region22: #{lut_linear_forward.1} parent=0 // pred_check
    %p23 = pneg %p22
  $region23: #{lut_linear_forward.1} parent=0 // pred_check_branch
    %25 = sbr.rel (%p23) target = $region25
  $region24: #{lut_linear_forward.1} parent=0 // pred_region
    %26 = vst [vmem:[%s5] sm:$0xff] 0.0
    %27 = vst [vmem:[%s5 + $0x8] sm:$0xff] 0.0
    %28 = vst [vmem:[#allocation2] sm:$0xff] 0.0
    %29 = vst [vmem:[#allocation2 + $0x8] sm:$0xff] 0.0
  $region25: #{lut_linear_forward.1} parent=0 // pred_fallthru
    _
  %v30 = vld [vmem:[%s0] sm:$0xff]
  %v31 = vld [vmem:[%s0 + $0x8] sm:$0xff]
  %v32 = vld [vmem:[%s2] sm:$0xff]
  %v33 = vld [vmem:[%s2 + $0x8] sm:$0xff]
  %v34 = vld [vmem:[%s2 + $0x10] sm:$0xff]
  %v35 = vld [vmem:[%s2 + $0x18] sm:$0xff]
  %v36 = vld [vmem:[%s5] sm:$0xff]
  %v37 = vld [vmem:[%s5 + $0x8] sm:$0xff]
  %v38 = vld [vmem:[%s1] sm:$0xff]
  %v39 = vld [vmem:[%s1 + $0x8] sm:$0xff]
  %v40 = vld [vmem:[%s1 + $0x10] sm:$0xff]
  %v41 = vld [vmem:[%s1 + $0x18] sm:$0xff]
  %vm42 = vcmask 261120
  %v44 = vsel %vm42, %v30, 0
  %v47 = vsel %vm42, %v31, 0
  %49 = vmatprep.subr.mxu0 0.0
  %50 = vmatpush1.msra.mxu0 %v38
  %51 = vmatprep.subr.mxu0 0.0
  %52 = vmatpush1.msra.mxu0 %v39
  %53 = vmatprep.subr.mxu0 0.0
  %54 = vmatpush1.msra.mxu0 %v40
  %55 = vmatprep.subr.mxu0 0.0
  %56 = vmatpush1.msra.mxu0 %v41
  %57 = vmatprep.subr.mxu0 0.0
  %58 = vmatpush1.msra.mxu0 0.0
  %59 = vmatprep.subr.mxu0 0.0
  %60 = vmatpush1.msra.mxu0 0.0
  %61 = vmatprep.subr.mxu0 0.0
  %62 = vmatpush1.msra.mxu0 0.0
  %63 = vmatprep.subr.mxu0 0.0
  %64 = vmatpush1.msra.mxu0 0.0
  %65 = vmatprep.subr.mxu0 0.0
  %66 = vmatpush1.msra.mxu0 0.0
  %67 = vmatprep.subr.mxu0 0.0
  %68 = vmatpush1.msra.mxu0 0.0
  %69 = vmatprep.subr.mxu0 0.0
  %70 = vmatpush1.msra.mxu0 0.0
  %71 = vmatprep.subr.mxu0 0.0
  %72 = vmatpush1.msra.mxu0 0.0
  %73 = vmatprep.subr.mxu0 0.0
  %74 = vmatpush1.msra.mxu0 0.0
  %75 = vmatprep.subr.mxu0 0.0
  %76 = vmatpush1.msra.mxu0 0.0
  %77 = vmatprep.subr.mxu0 0.0
  %78 = vmatpush1.msra.mxu0 0.0
  %79 = vmatprep.subr.mxu0 0.0
  %80 = vmatpush1.msra.mxu0 0.0
  %81 = vmatprep.subr.mxu0 0.0
  %82 = vmatpush1.msra.mxu0 0.0
  %83 = vmatprep.subr.mxu0 0.0
  %84 = vmatpush1.msra.mxu0 0.0
  %85 = vmatprep.subr.mxu0 0.0
  %86 = vmatpush1.msra.mxu0 0.0
  %87 = vmatprep.subr.mxu0 0.0
  %88 = vmatpush1.msra.mxu0 0.0
  %89 = vmatprep.subr.mxu0 0.0
  %90 = vmatpush1.msra.mxu0 0.0
  %91 = vmatprep.subr.mxu0 0.0
  %92 = vmatpush1.msra.mxu0 0.0
  %93 = vmatprep.subr.mxu0 0.0
  %94 = vmatpush1.msra.mxu0 0.0
  %95 = vmatprep.subr.mxu0 0.0
  %96 = vmatpush1.msra.mxu0 0.0
  %97 = vmatprep.subr.mxu0 0.0
  %98 = vmatpush1.msra.mxu0 0.0
  %99 = vmatprep.subr.mxu0 0.0
  %100 = vmatpush1.msra.mxu0 0.0
  %101 = vmatprep.subr.mxu0 0.0
  %102 = vmatpush1.msra.mxu0 0.0
  %103 = vmatprep.subr.mxu0 0.0
  %104 = vmatpush1.msra.mxu0 0.0
  %105 = vmatprep.subr.mxu0 0.0
  %106 = vmatpush1.msra.mxu0 0.0
  %107 = vmatprep.subr.mxu0 0.0
  %108 = vmatpush1.msra.mxu0 0.0
  %109 = vmatprep.subr.mxu0 0.0
  %110 = vmatpush1.msra.mxu0 0.0
  %111 = vmatprep.subr.mxu0 0.0
  %112 = vmatpush1.msra.mxu0 0.0
  %113 = vmatprep.mubr.f32.mxu0 0.0
  %114 = vmatmul.mubr.f32.gmra.mrb[0].mxu0 %v44
  %v115 = vpop.f32.mrb[0].mxu0
  %v116 = vadd.f32 0.0, %v115
  %v117 = vpop.f32.mrb[0].mxu0
  %118 = vmatprep.mubr.f32.mxu0 0.0
  %119 = vmatmul.mubr.f32.gmra.mrb[0].mxu0 %v47
  %v120 = vpop.f32.mrb[0].mxu0
  %v121 = vadd.f32 0.0, %v120
  %v122 = vpop.f32.mrb[0].mxu0
  %123 = vdwg.mxu0
  %v124 = vadd.f32 %v36, %v116
  %v125 = vadd.f32 %v37, %v121
  %126 = vst [vmem:[%s5] sm:$0xff] %v124
  %127 = vst [vmem:[%s5 + $0x8] sm:$0xff] %v125
  %v128 = vlaneseq
  %v129 = vand.u32 %v128, 127
  %130 = vset.pattern.permute.xlu0 0
  %131 = vperm.xlu0 %130, %v30
  %v132 = vpop.permute.xlu0 %131
  %134 = vset.pattern.permute.xlu0 0
  %135 = vperm.xlu0 %134, %v31
  %v136 = vpop.permute.xlu0 %135
  %v138 = vlaneseq
  %v139 = vshrl.u32 %v138, 7
  %v140 = vsub.s32 0, %v139
  %v141 = vrot.slane %v32, %v140
  %v142 = vsub.f32 %v132, %v141
  %v143 = vsub.f32 %v136, %v141
  %v144 = vand.u32 2147483647, %v142
  %v145 = vand.u32 2147483647, %v143
  %146 = vset.pattern.permute.xlu0 1
  %147 = vperm.xlu0 %146, %v30
  %v148 = vpop.permute.xlu0 %147
  %150 = vset.pattern.permute.xlu0 1
  %151 = vperm.xlu0 %150, %v31
  %v152 = vpop.permute.xlu0 %151
  %v154 = vlaneseq
  %v155 = vshrl.u32 %v154, 7
  %v156 = vsub.s32 1, %v155
  %v157 = vrot.slane %v32, %v156
  %v158 = vsub.f32 %v148, %v157
  %v159 = vsub.f32 %v152, %v157
  %v160 = vand.u32 2147483647, %v158
  %v161 = vand.u32 2147483647, %v159
  %v162 = vmax.f32 %v144, %v160
  %v163 = vmax.f32 %v145, %v161
  %164 = vset.pattern.permute.xlu0 2
  %165 = vperm.xlu0 %164, %v30
  %v166 = vpop.permute.xlu0 %165
  %168 = vset.pattern.permute.xlu0 2
  %169 = vperm.xlu0 %168, %v31
  %v170 = vpop.permute.xlu0 %169
  %v172 = vlaneseq
  %v173 = vshrl.u32 %v172, 7
  %v174 = vsub.s32 2, %v173
  %v175 = vrot.slane %v32, %v174
  %v176 = vsub.f32 %v166, %v175
  %v177 = vsub.f32 %v170, %v175
  %v178 = vand.u32 2147483647, %v176
  %v179 = vand.u32 2147483647, %v177
  %v180 = vmax.f32 %v162, %v178
  %v181 = vmax.f32 %v163, %v179
  %182 = vset.pattern.permute.xlu0 3
  %183 = vperm.xlu0 %182, %v30
  %v184 = vpop.permute.xlu0 %183
  %186 = vset.pattern.permute.xlu0 3
  %187 = vperm.xlu0 %186, %v31
  %v188 = vpop.permute.xlu0 %187
  %v190 = vlaneseq
  %v191 = vshrl.u32 %v190, 7
  %v192 = vsub.s32 3, %v191
  %v193 = vrot.slane %v32, %v192
  %v194 = vsub.f32 %v184, %v193
  %v195 = vsub.f32 %v188, %v193
  %v196 = vand.u32 2147483647, %v194
  %v197 = vand.u32 2147483647, %v195
  %v198 = vmax.f32 %v180, %v196
  %v199 = vmax.f32 %v181, %v197
  %200 = vset.pattern.permute.xlu0 4
  %201 = vperm.xlu0 %200, %v30
  %v202 = vpop.permute.xlu0 %201
  %204 = vset.pattern.permute.xlu0 4
  %205 = vperm.xlu0 %204, %v31
  %v206 = vpop.permute.xlu0 %205
  %v208 = vlaneseq
  %v209 = vshrl.u32 %v208, 7
  %v210 = vsub.s32 4, %v209
  %v211 = vrot.slane %v32, %v210
  %v212 = vsub.f32 %v202, %v211
  %v213 = vsub.f32 %v206, %v211
  %v214 = vand.u32 2147483647, %v212
  %v215 = vand.u32 2147483647, %v213
  %v216 = vmax.f32 %v198, %v214
  %v217 = vmax.f32 %v199, %v215
  %218 = vset.pattern.permute.xlu0 5
  %219 = vperm.xlu0 %218, %v30
  %v220 = vpop.permute.xlu0 %219
  %222 = vset.pattern.permute.xlu0 5
  %223 = vperm.xlu0 %222, %v31
  %v224 = vpop.permute.xlu0 %223
  %v226 = vlaneseq
  %v227 = vshrl.u32 %v226, 7
  %v228 = vsub.s32 5, %v227
  %v229 = vrot.slane %v32, %v228
  %v230 = vsub.f32 %v220, %v229
  %v231 = vsub.f32 %v224, %v229
  %v232 = vand.u32 2147483647, %v230
  %v233 = vand.u32 2147483647, %v231
  %v234 = vmax.f32 %v216, %v232
  %v235 = vmax.f32 %v217, %v233
  %236 = vset.pattern.permute.xlu0 6
  %237 = vperm.xlu0 %236, %v30
  %v238 = vpop.permute.xlu0 %237
  %240 = vset.pattern.permute.xlu0 6
  %241 = vperm.xlu0 %240, %v31
  %v242 = vpop.permute.xlu0 %241
  %v244 = vlaneseq
  %v245 = vshrl.u32 %v244, 7
  %v246 = vsub.s32 6, %v245
  %v247 = vrot.slane %v32, %v246
  %v248 = vsub.f32 %v238, %v247
  %v249 = vsub.f32 %v242, %v247
  %v250 = vand.u32 2147483647, %v248
  %v251 = vand.u32 2147483647, %v249
  %v252 = vmax.f32 %v234, %v250
  %v253 = vmax.f32 %v235, %v251
  %254 = vset.pattern.permute.xlu0 7
  %255 = vperm.xlu0 %254, %v30
  %v256 = vpop.permute.xlu0 %255
  %258 = vset.pattern.permute.xlu0 7
  %259 = vperm.xlu0 %258, %v31
  %v260 = vpop.permute.xlu0 %259
  %v262 = vlaneseq
  %v263 = vshrl.u32 %v262, 7
  %v264 = vsub.s32 7, %v263
  %v265 = vrot.slane %v32, %v264
  %v266 = vsub.f32 %v256, %v265
  %v267 = vsub.f32 %v260, %v265
  %v268 = vand.u32 2147483647, %v266
  %v269 = vand.u32 2147483647, %v267
  %v270 = vmax.f32 %v252, %v268
  %v271 = vmax.f32 %v253, %v269
  %272 = vset.pattern.permute.xlu0 8
  %273 = vperm.xlu0 %272, %v30
  %v274 = vpop.permute.xlu0 %273
  %276 = vset.pattern.permute.xlu0 8
  %277 = vperm.xlu0 %276, %v31
  %v278 = vpop.permute.xlu0 %277
  %v280 = vlaneseq
  %v281 = vshrl.u32 %v280, 7
  %v282 = vsub.s32 0, %v281
  %v283 = vrot.slane %v33, %v282
  %v284 = vsub.f32 %v274, %v283
  %v285 = vsub.f32 %v278, %v283
  %v286 = vand.u32 2147483647, %v284
  %v287 = vand.u32 2147483647, %v285
  %v288 = vmax.f32 %v270, %v286
  %v289 = vmax.f32 %v271, %v287
  %290 = vset.pattern.permute.xlu0 9
  %291 = vperm.xlu0 %290, %v30
  %v292 = vpop.permute.xlu0 %291
  %294 = vset.pattern.permute.xlu0 9
  %295 = vperm.xlu0 %294, %v31
  %v296 = vpop.permute.xlu0 %295
  %v298 = vlaneseq
  %v299 = vshrl.u32 %v298, 7
  %v300 = vsub.s32 1, %v299
  %v301 = vrot.slane %v33, %v300
  %v302 = vsub.f32 %v292, %v301
  %v303 = vsub.f32 %v296, %v301
  %v304 = vand.u32 2147483647, %v302
  %v305 = vand.u32 2147483647, %v303
  %v306 = vmax.f32 %v288, %v304
  %v307 = vmax.f32 %v289, %v305
  %308 = vset.pattern.permute.xlu0 10
  %309 = vperm.xlu0 %308, %v30
  %v310 = vpop.permute.xlu0 %309
  %312 = vset.pattern.permute.xlu0 10
  %313 = vperm.xlu0 %312, %v31
  %v314 = vpop.permute.xlu0 %313
  %v316 = vlaneseq
  %v317 = vshrl.u32 %v316, 7
  %v318 = vsub.s32 2, %v317
  %v319 = vrot.slane %v33, %v318
  %v320 = vsub.f32 %v310, %v319
  %v321 = vsub.f32 %v314, %v319
  %v322 = vand.u32 2147483647, %v320
  %v323 = vand.u32 2147483647, %v321
  %v324 = vmax.f32 %v306, %v322
  %v325 = vmax.f32 %v307, %v323
  %326 = vset.pattern.permute.xlu0 11
  %327 = vperm.xlu0 %326, %v30
  %v328 = vpop.permute.xlu0 %327
  %330 = vset.pattern.permute.xlu0 11
  %331 = vperm.xlu0 %330, %v31
  %v332 = vpop.permute.xlu0 %331
  %v334 = vlaneseq
  %v335 = vshrl.u32 %v334, 7
  %v336 = vsub.s32 3, %v335
  %v337 = vrot.slane %v33, %v336
  %v338 = vsub.f32 %v328, %v337
  %v339 = vsub.f32 %v332, %v337
  %v340 = vand.u32 2147483647, %v338
  %v341 = vand.u32 2147483647, %v339
  %v342 = vmax.f32 %v324, %v340
  %v343 = vmax.f32 %v325, %v341
  %344 = vset.pattern.permute.xlu0 12
  %345 = vperm.xlu0 %344, %v30
  %v346 = vpop.permute.xlu0 %345
  %348 = vset.pattern.permute.xlu0 12
  %349 = vperm.xlu0 %348, %v31
  %v350 = vpop.permute.xlu0 %349
  %v352 = vlaneseq
  %v353 = vshrl.u32 %v352, 7
  %v354 = vsub.s32 4, %v353
  %v355 = vrot.slane %v33, %v354
  %v356 = vsub.f32 %v346, %v355
  %v357 = vsub.f32 %v350, %v355
  %v358 = vand.u32 2147483647, %v356
  %v359 = vand.u32 2147483647, %v357
  %v360 = vmax.f32 %v342, %v358
  %v361 = vmax.f32 %v343, %v359
  %362 = vset.pattern.permute.xlu0 13
  %363 = vperm.xlu0 %362, %v30
  %v364 = vpop.permute.xlu0 %363
  %366 = vset.pattern.permute.xlu0 13
  %367 = vperm.xlu0 %366, %v31
  %v368 = vpop.permute.xlu0 %367
  %v370 = vlaneseq
  %v371 = vshrl.u32 %v370, 7
  %v372 = vsub.s32 5, %v371
  %v373 = vrot.slane %v33, %v372
  %v374 = vsub.f32 %v364, %v373
  %v375 = vsub.f32 %v368, %v373
  %v376 = vand.u32 2147483647, %v374
  %v377 = vand.u32 2147483647, %v375
  %v378 = vmax.f32 %v360, %v376
  %v379 = vmax.f32 %v361, %v377
  %380 = vset.pattern.permute.xlu0 14
  %381 = vperm.xlu0 %380, %v30
  %v382 = vpop.permute.xlu0 %381
  %384 = vset.pattern.permute.xlu0 14
  %385 = vperm.xlu0 %384, %v31
  %v386 = vpop.permute.xlu0 %385
  %v388 = vlaneseq
  %v389 = vshrl.u32 %v388, 7
  %v390 = vsub.s32 6, %v389
  %v391 = vrot.slane %v33, %v390
  %v392 = vsub.f32 %v382, %v391
  %v393 = vsub.f32 %v386, %v391
  %v394 = vand.u32 2147483647, %v392
  %v395 = vand.u32 2147483647, %v393
  %v396 = vmax.f32 %v378, %v394
  %v397 = vmax.f32 %v379, %v395
  %398 = vset.pattern.permute.xlu0 15
  %399 = vperm.xlu0 %398, %v30
  %v400 = vpop.permute.xlu0 %399
  %402 = vset.pattern.permute.xlu0 15
  %403 = vperm.xlu0 %402, %v31
  %v404 = vpop.permute.xlu0 %403
  %v406 = vlaneseq
  %v407 = vshrl.u32 %v406, 7
  %v408 = vsub.s32 7, %v407
  %v409 = vrot.slane %v33, %v408
  %v410 = vsub.f32 %v400, %v409
  %v411 = vsub.f32 %v404, %v409
  %v412 = vand.u32 2147483647, %v410
  %v413 = vand.u32 2147483647, %v411
  %v414 = vmax.f32 %v396, %v412
  %v415 = vmax.f32 %v397, %v413
  %vm416 = vcmask 130048
  %v417 = vsel %vm416, %v414, inf
  %418 = vmin.index.xlane.f32.xlu0 %v417
  %v419 = vpop.xlane.xlu0 %418
  %v420 = vsel %vm416, %v415, inf
  %421 = vmin.index.xlane.f32.xlu0 %v420
  %v422 = vpop.xlane.xlu0 %421
  %vm423 = vcmp.eq.s32.totalorder %v419, %v129
  %vm424 = vcmp.eq.s32.totalorder %v422, %v129
  %v425 = vsel %vm423, 1, 0
  %v426 = vsel %vm424, 1, 0
  %v427 = vcvt.s32.f32 %v425
  %v428 = vcvt.s32.f32 %v426
  %429 = vst.msk [vmem:[#allocation3] sm:$0xff] %vm416, %v427
  %430 = vst.msk [vmem:[#allocation3 + $0x8] sm:$0xff] %vm416, %v428
  %431 = vset.pattern.permute.xlu0 16
  %432 = vperm.xlu0 %431, %v30
  %v433 = vpop.permute.xlu0 %432
  %435 = vset.pattern.permute.xlu0 16
  %436 = vperm.xlu0 %435, %v31
  %v437 = vpop.permute.xlu0 %436
  %v439 = vlaneseq
  %v440 = vshrl.u32 %v439, 7
  %v441 = vsub.s32 0, %v440
  %v442 = vrot.slane %v34, %v441
  %v443 = vsub.f32 %v433, %v442
  %v444 = vsub.f32 %v437, %v442
  %v445 = vand.u32 2147483647, %v443
  %v446 = vand.u32 2147483647, %v444
  %447 = vset.pattern.permute.xlu0 17
  %448 = vperm.xlu0 %447, %v30
  %v449 = vpop.permute.xlu0 %448
  %451 = vset.pattern.permute.xlu0 17
  %452 = vperm.xlu0 %451, %v31
  %v453 = vpop.permute.xlu0 %452
  %v455 = vlaneseq
  %v456 = vshrl.u32 %v455, 7
  %v457 = vsub.s32 1, %v456
  %v458 = vrot.slane %v34, %v457
  %v459 = vsub.f32 %v449, %v458
  %v460 = vsub.f32 %v453, %v458
  %v461 = vand.u32 2147483647, %v459
  %v462 = vand.u32 2147483647, %v460
  %v463 = vmax.f32 %v445, %v461
  %v464 = vmax.f32 %v446, %v462
  %465 = vset.pattern.permute.xlu0 18
  %466 = vperm.xlu0 %465, %v30
  %v467 = vpop.permute.xlu0 %466
  %469 = vset.pattern.permute.xlu0 18
  %470 = vperm.xlu0 %469, %v31
  %v471 = vpop.permute.xlu0 %470
  %v473 = vlaneseq
  %v474 = vshrl.u32 %v473, 7
  %v475 = vsub.s32 2, %v474
  %v476 = vrot.slane %v34, %v475
  %v477 = vsub.f32 %v467, %v476
  %v478 = vsub.f32 %v471, %v476
  %v479 = vand.u32 2147483647, %v477
  %v480 = vand.u32 2147483647, %v478
  %v481 = vmax.f32 %v463, %v479
  %v482 = vmax.f32 %v464, %v480
  %483 = vset.pattern.permute.xlu0 19
  %484 = vperm.xlu0 %483, %v30
  %v485 = vpop.permute.xlu0 %484
  %487 = vset.pattern.permute.xlu0 19
  %488 = vperm.xlu0 %487, %v31
  %v489 = vpop.permute.xlu0 %488
  %v491 = vlaneseq
  %v492 = vshrl.u32 %v491, 7
  %v493 = vsub.s32 3, %v492
  %v494 = vrot.slane %v34, %v493
  %v495 = vsub.f32 %v485, %v494
  %v496 = vsub.f32 %v489, %v494
  %v497 = vand.u32 2147483647, %v495
  %v498 = vand.u32 2147483647, %v496
  %v499 = vmax.f32 %v481, %v497
  %v500 = vmax.f32 %v482, %v498
  %501 = vset.pattern.permute.xlu0 20
  %502 = vperm.xlu0 %501, %v30
  %v503 = vpop.permute.xlu0 %502
  %505 = vset.pattern.permute.xlu0 20
  %506 = vperm.xlu0 %505, %v31
  %v507 = vpop.permute.xlu0 %506
  %v509 = vlaneseq
  %v510 = vshrl.u32 %v509, 7
  %v511 = vsub.s32 4, %v510
  %v512 = vrot.slane %v34, %v511
  %v513 = vsub.f32 %v503, %v512
  %v514 = vsub.f32 %v507, %v512
  %v515 = vand.u32 2147483647, %v513
  %v516 = vand.u32 2147483647, %v514
  %v517 = vmax.f32 %v499, %v515
  %v518 = vmax.f32 %v500, %v516
  %519 = vset.pattern.permute.xlu0 21
  %520 = vperm.xlu0 %519, %v30
  %v521 = vpop.permute.xlu0 %520
  %523 = vset.pattern.permute.xlu0 21
  %524 = vperm.xlu0 %523, %v31
  %v525 = vpop.permute.xlu0 %524
  %v527 = vlaneseq
  %v528 = vshrl.u32 %v527, 7
  %v529 = vsub.s32 5, %v528
  %v530 = vrot.slane %v34, %v529
  %v531 = vsub.f32 %v521, %v530
  %v532 = vsub.f32 %v525, %v530
  %v533 = vand.u32 2147483647, %v531
  %v534 = vand.u32 2147483647, %v532
  %v535 = vmax.f32 %v517, %v533
  %v536 = vmax.f32 %v518, %v534
  %537 = vset.pattern.permute.xlu0 22
  %538 = vperm.xlu0 %537, %v30
  %v539 = vpop.permute.xlu0 %538
  %541 = vset.pattern.permute.xlu0 22
  %542 = vperm.xlu0 %541, %v31
  %v543 = vpop.permute.xlu0 %542
  %v545 = vlaneseq
  %v546 = vshrl.u32 %v545, 7
  %v547 = vsub.s32 6, %v546
  %v548 = vrot.slane %v34, %v547
  %v549 = vsub.f32 %v539, %v548
  %v550 = vsub.f32 %v543, %v548
  %v551 = vand.u32 2147483647, %v549
  %v552 = vand.u32 2147483647, %v550
  %v553 = vmax.f32 %v535, %v551
  %v554 = vmax.f32 %v536, %v552
  %555 = vset.pattern.permute.xlu0 23
  %556 = vperm.xlu0 %555, %v30
  %v557 = vpop.permute.xlu0 %556
  %559 = vset.pattern.permute.xlu0 23
  %560 = vperm.xlu0 %559, %v31
  %v561 = vpop.permute.xlu0 %560
  %v563 = vlaneseq
  %v564 = vshrl.u32 %v563, 7
  %v565 = vsub.s32 7, %v564
  %v566 = vrot.slane %v34, %v565
  %v567 = vsub.f32 %v557, %v566
  %v568 = vsub.f32 %v561, %v566
  %v569 = vand.u32 2147483647, %v567
  %v570 = vand.u32 2147483647, %v568
  %v571 = vmax.f32 %v553, %v569
  %v572 = vmax.f32 %v554, %v570
  %573 = vset.pattern.permute.xlu0 24
  %574 = vperm.xlu0 %573, %v30
  %v575 = vpop.permute.xlu0 %574
  %577 = vset.pattern.permute.xlu0 24
  %578 = vperm.xlu0 %577, %v31
  %v579 = vpop.permute.xlu0 %578
  %v581 = vlaneseq
  %v582 = vshrl.u32 %v581, 7
  %v583 = vsub.s32 0, %v582
  %v584 = vrot.slane %v35, %v583
  %v585 = vsub.f32 %v575, %v584
  %v586 = vsub.f32 %v579, %v584
  %v587 = vand.u32 2147483647, %v585
  %v588 = vand.u32 2147483647, %v586
  %v589 = vmax.f32 %v571, %v587
  %v590 = vmax.f32 %v572, %v588
  %591 = vset.pattern.permute.xlu0 25
  %592 = vperm.xlu0 %591, %v30
  %v593 = vpop.permute.xlu0 %592
  %595 = vset.pattern.permute.xlu0 25
  %596 = vperm.xlu0 %595, %v31
  %v597 = vpop.permute.xlu0 %596
  %v599 = vlaneseq
  %v600 = vshrl.u32 %v599, 7
  %v601 = vsub.s32 1, %v600
  %v602 = vrot.slane %v35, %v601
  %v603 = vsub.f32 %v593, %v602
  %v604 = vsub.f32 %v597, %v602
  %v605 = vand.u32 2147483647, %v603
  %v606 = vand.u32 2147483647, %v604
  %v607 = vmax.f32 %v589, %v605
  %v608 = vmax.f32 %v590, %v606
  %609 = vset.pattern.permute.xlu0 26
  %610 = vperm.xlu0 %609, %v30
  %v611 = vpop.permute.xlu0 %610
  %613 = vset.pattern.permute.xlu0 26
  %614 = vperm.xlu0 %613, %v31
  %v615 = vpop.permute.xlu0 %614
  %v617 = vlaneseq
  %v618 = vshrl.u32 %v617, 7
  %v619 = vsub.s32 2, %v618
  %v620 = vrot.slane %v35, %v619
  %v621 = vsub.f32 %v611, %v620
  %v622 = vsub.f32 %v615, %v620
  %v623 = vand.u32 2147483647, %v621
  %v624 = vand.u32 2147483647, %v622
  %v625 = vmax.f32 %v607, %v623
  %v626 = vmax.f32 %v608, %v624
  %627 = vset.pattern.permute.xlu0 27
  %628 = vperm.xlu0 %627, %v30
  %v629 = vpop.permute.xlu0 %628
  %631 = vset.pattern.permute.xlu0 27
  %632 = vperm.xlu0 %631, %v31
  %v633 = vpop.permute.xlu0 %632
  %v635 = vlaneseq
  %v636 = vshrl.u32 %v635, 7
  %v637 = vsub.s32 3, %v636
  %v638 = vrot.slane %v35, %v637
  %v639 = vsub.f32 %v629, %v638
  %v640 = vsub.f32 %v633, %v638
  %v641 = vand.u32 2147483647, %v639
  %v642 = vand.u32 2147483647, %v640
  %v643 = vmax.f32 %v625, %v641
  %v644 = vmax.f32 %v626, %v642
  %645 = vset.pattern.permute.xlu0 28
  %646 = vperm.xlu0 %645, %v30
  %v647 = vpop.permute.xlu0 %646
  %649 = vset.pattern.permute.xlu0 28
  %650 = vperm.xlu0 %649, %v31
  %v651 = vpop.permute.xlu0 %650
  %v653 = vlaneseq
  %v654 = vshrl.u32 %v653, 7
  %v655 = vsub.s32 4, %v654
  %v656 = vrot.slane %v35, %v655
  %v657 = vsub.f32 %v647, %v656
  %v658 = vsub.f32 %v651, %v656
  %v659 = vand.u32 2147483647, %v657
  %v660 = vand.u32 2147483647, %v658
  %v661 = vmax.f32 %v643, %v659
  %v662 = vmax.f32 %v644, %v660
  %663 = vset.pattern.permute.xlu0 29
  %664 = vperm.xlu0 %663, %v30
  %v665 = vpop.permute.xlu0 %664
  %667 = vset.pattern.permute.xlu0 29
  %668 = vperm.xlu0 %667, %v31
  %v669 = vpop.permute.xlu0 %668
  %v671 = vlaneseq
  %v672 = vshrl.u32 %v671, 7
  %v673 = vsub.s32 5, %v672
  %v674 = vrot.slane %v35, %v673
  %v675 = vsub.f32 %v665, %v674
  %v676 = vsub.f32 %v669, %v674
  %v677 = vand.u32 2147483647, %v675
  %v678 = vand.u32 2147483647, %v676
  %v679 = vmax.f32 %v661, %v677
  %v680 = vmax.f32 %v662, %v678
  %681 = vset.pattern.permute.xlu0 30
  %682 = vperm.xlu0 %681, %v30
  %v683 = vpop.permute.xlu0 %682
  %685 = vset.pattern.permute.xlu0 30
  %686 = vperm.xlu0 %685, %v31
  %v687 = vpop.permute.xlu0 %686
  %v689 = vlaneseq
  %v690 = vshrl.u32 %v689, 7
  %v691 = vsub.s32 6, %v690
  %v692 = vrot.slane %v35, %v691
  %v693 = vsub.f32 %v683, %v692
  %v694 = vsub.f32 %v687, %v692
  %v695 = vand.u32 2147483647, %v693
  %v696 = vand.u32 2147483647, %v694
  %v697 = vmax.f32 %v679, %v695
  %v698 = vmax.f32 %v680, %v696
  %699 = vset.pattern.permute.xlu0 31
  %700 = vperm.xlu0 %699, %v30
  %v701 = vpop.permute.xlu0 %700
  %703 = vset.pattern.permute.xlu0 31
  %704 = vperm.xlu0 %703, %v31
  %v705 = vpop.permute.xlu0 %704
  %v707 = vlaneseq
  %v708 = vshrl.u32 %v707, 7
  %v709 = vsub.s32 7, %v708
  %v710 = vrot.slane %v35, %v709
  %v711 = vsub.f32 %v701, %v710
  %v712 = vsub.f32 %v705, %v710
  %v713 = vand.u32 2147483647, %v711
  %v714 = vand.u32 2147483647, %v712
  %v715 = vmax.f32 %v697, %v713
  %v716 = vmax.f32 %v698, %v714
  %v717 = vsel %vm416, %v715, inf
  %718 = vmin.index.xlane.f32.xlu0 %v717
  %v719 = vpop.xlane.xlu0 %718
  %v720 = vsel %vm416, %v716, inf
  %721 = vmin.index.xlane.f32.xlu0 %v720
  %v722 = vpop.xlane.xlu0 %721
  %vm723 = vcmp.eq.s32.totalorder %v719, %v129
  %vm724 = vcmp.eq.s32.totalorder %v722, %v129
  %v725 = vsel %vm723, 1, 0
  %v726 = vsel %vm724, 1, 0
  %v727 = vcvt.s32.f32 %v725
  %v728 = vcvt.s32.f32 %v726
  %731 = vrot.lane.b32.xlu0 %v727, 16
  %v732 = vpop.permute.xlu0 %731
  %733 = vrot.lane.b32.xlu0 %v728, 16
  %v734 = vpop.permute.xlu0 %733
  %vm737 = vcmask 261248
  %738 = vst.msk [vmem:[#allocation3] sm:$0xff] %vm737, %v732
  %739 = vst.msk [vmem:[#allocation3 + $0x8] sm:$0xff] %vm737, %v734
  %v740 = vld [vmem:[#allocation2] sm:$0xff]
  %v741 = vld [vmem:[#allocation2 + $0x8] sm:$0xff]
  %v742 = vld [vmem:[#allocation3] sm:$0xff]
  %v743 = vld [vmem:[#allocation3 + $0x8] sm:$0xff]
  %v744 = vld [vmem:[%s3] sm:$0xff]
  %v745 = vld [vmem:[%s3 + $0x8] sm:$0xff]
  %v746 = vld [vmem:[%s3 + $0x10] sm:$0xff]
  %v747 = vld [vmem:[%s3 + $0x18] sm:$0xff]
  %v749 = vsel %vm42, %v742, 0
  %v752 = vsel %vm42, %v743, 0
  %754 = vmatprep.subr.mxu0 0.0
  %755 = vmatpush1.msra.mxu0 %v744
  %756 = vmatprep.subr.mxu0 0.0
  %757 = vmatpush1.msra.mxu0 %v745
  %758 = vmatprep.subr.mxu0 0.0
  %759 = vmatpush1.msra.mxu0 %v746
  %760 = vmatprep.subr.mxu0 0.0
  %761 = vmatpush1.msra.mxu0 %v747
  %762 = vmatprep.subr.mxu0 0.0
  %763 = vmatpush1.msra.mxu0 0.0
  %764 = vmatprep.subr.mxu0 0.0
  %765 = vmatpush1.msra.mxu0 0.0
  %766 = vmatprep.subr.mxu0 0.0
  %767 = vmatpush1.msra.mxu0 0.0
  %768 = vmatprep.subr.mxu0 0.0
  %769 = vmatpush1.msra.mxu0 0.0
  %770 = vmatprep.subr.mxu0 0.0
  %771 = vmatpush1.msra.mxu0 0.0
  %772 = vmatprep.subr.mxu0 0.0
  %773 = vmatpush1.msra.mxu0 0.0
  %774 = vmatprep.subr.mxu0 0.0
  %775 = vmatpush1.msra.mxu0 0.0
  %776 = vmatprep.subr.mxu0 0.0
  %777 = vmatpush1.msra.mxu0 0.0
  %778 = vmatprep.subr.mxu0 0.0
  %779 = vmatpush1.msra.mxu0 0.0
  %780 = vmatprep.subr.mxu0 0.0
  %781 = vmatpush1.msra.mxu0 0.0
  %782 = vmatprep.subr.mxu0 0.0
  %783 = vmatpush1.msra.mxu0 0.0
  %784 = vmatprep.subr.mxu0 0.0
  %785 = vmatpush1.msra.mxu0 0.0
  %786 = vmatprep.subr.mxu0 0.0
  %787 = vmatpush1.msra.mxu0 0.0
  %788 = vmatprep.subr.mxu0 0.0
  %789 = vmatpush1.msra.mxu0 0.0
  %790 = vmatprep.subr.mxu0 0.0
  %791 = vmatpush1.msra.mxu0 0.0
  %792 = vmatprep.subr.mxu0 0.0
  %793 = vmatpush1.msra.mxu0 0.0
  %794 = vmatprep.subr.mxu0 0.0
  %795 = vmatpush1.msra.mxu0 0.0
  %796 = vmatprep.subr.mxu0 0.0
  %797 = vmatpush1.msra.mxu0 0.0
  %798 = vmatprep.subr.mxu0 0.0
  %799 = vmatpush1.msra.mxu0 0.0
  %800 = vmatprep.subr.mxu0 0.0
  %801 = vmatpush1.msra.mxu0 0.0
  %802 = vmatprep.subr.mxu0 0.0
  %803 = vmatpush1.msra.mxu0 0.0
  %804 = vmatprep.subr.mxu0 0.0
  %805 = vmatpush1.msra.mxu0 0.0
  %806 = vmatprep.subr.mxu0 0.0
  %807 = vmatpush1.msra.mxu0 0.0
  %808 = vmatprep.subr.mxu0 0.0
  %809 = vmatpush1.msra.mxu0 0.0
  %810 = vmatprep.subr.mxu0 0.0
  %811 = vmatpush1.msra.mxu0 0.0
  %812 = vmatprep.subr.mxu0 0.0
  %813 = vmatpush1.msra.mxu0 0.0
  %814 = vmatprep.subr.mxu0 0.0
  %815 = vmatpush1.msra.mxu0 0.0
  %816 = vmatprep.subr.mxu0 0.0
  %817 = vmatpush1.msra.mxu0 0.0
  %818 = vmatprep.mubr.f32.mxu0 0.0
  %819 = vmatmul.mubr.f32.gmra.mrb[0].mxu0 %v749
  %v820 = vpop.f32.mrb[0].mxu0
  %v821 = vadd.f32 0.0, %v820
  %v822 = vpop.f32.mrb[0].mxu0
  %823 = vmatprep.mubr.f32.mxu0 0.0
  %824 = vmatmul.mubr.f32.gmra.mrb[0].mxu0 %v752
  %v825 = vpop.f32.mrb[0].mxu0
  %v826 = vadd.f32 0.0, %v825
  %v827 = vpop.f32.mrb[0].mxu0
  %828 = vdwg.mxu0
  %v829 = vadd.f32 %v740, %v821
  %v830 = vadd.f32 %v741, %v826
  %831 = vst [vmem:[#allocation2] sm:$0xff] %v829
  %832 = vst [vmem:[#allocation2 + $0x8] sm:$0xff] %v830
  // Predicated region
  $region26: #{lut_linear_forward.1} parent=0 // pred_check
    %p833 = pneg %p22
  $region27: #{lut_linear_forward.1} parent=0 // pred_check_branch
    %835 = sbr.rel (%p833) target = $region29
  $region28: #{lut_linear_forward.1} parent=0 // pred_region
    %v836 = vld [vmem:[%s5] sm:$0xff]
    %v837 = vld [vmem:[%s5 + $0x8] sm:$0xff]
    %v838 = vld [vmem:[#allocation2] sm:$0xff]
    %v839 = vld [vmem:[#allocation2 + $0x8] sm:$0xff]
    %v840 = vlaneseq
    %v841 = vshrl.u32 %v840, 7
    %v842 = vadd.s32 %v841, 8
    %s843 = smul.u32 0, 16
    %v844 = vstv %s843
    %v845 = vadd.s32 %v841, %v844
    %v846 = vadd.s32 %v842, %v844
    %vm847 = vcmp.lt.s32.totalorder %v845, 16
    %vm848 = vcmp.lt.s32.totalorder %v846, 16
    %v849 = vsel %vm847, 1, 0
    %v850 = vsel %vm848, 1, 0
    %v851 = vcvt.s32.f32 %v849
    %v852 = vcvt.s32.f32 %v850
    %v853 = vsub.f32 %v838, %v836
    %v854 = vsub.f32 %v839, %v837
    %v855 = vmul.f32 %v853, %v853
    %v856 = vmul.f32 %v854, %v854
    %v857 = vmul.f32 %v855, %v851
    %v858 = vmul.f32 %v856, %v852
    %v859 = vadd.f32 %v857, %v858
    %860 = vadd.xlane.f32.xlu0 %v859
    %v861 = vpop.xlane.xlu0 %860
    %v862 = vrot.slane %v861, 4
    %v863 = vadd.f32 %v861, %v862
    %v864 = vrot.slane %v863, 2
    %v865 = vadd.f32 %v863, %v864
    %v866 = vrot.slane %v865, 1
    %v867 = vadd.f32 %v865, %v866
    %s868 = vtos %v867
    %v869 = vstv %s868
    %870 = vst [vmem:[%s6] sm:$0xff] %v869
    %v871 = vld [vmem:[%s4] sm:$0x1]
    %v873 = vlaneseq
    %v874 = vshrl.u32 %v873, 7
    %v875 = vsub.s32 0, %v874
    %v876 = vrot.slane %v871, %v875
    %v878 = vadd.f32 %v838, %v876
    %v879 = vadd.f32 %v839, %v876
    %880 = vst [vmem:[%s5] sm:$0xff] %v878
    %881 = vst [vmem:[%s5 + $0x8] sm:$0xff] %v879
  $region29: #{lut_linear_forward.1} parent=0 // pred_fallthru
    _
  // Predicated region
  $region30: #{lut_linear_forward.1} parent=0 // pred_check
    _
  $region31: #{lut_linear_forward.1} parent=0 // pred_check_branch
    %883 = sbr.rel (0) target = $region33
  $region32: #{lut_linear_forward.1} parent=0 // pred_region
    _
  $region33: #{lut_linear_forward.1} parent=0 // pred_fallthru
    _
  // Predicated region
  $region34: #{lut_linear_forward.1} parent=0 // pred_check
    _
  $region35: #{lut_linear_forward.1} parent=0 // pred_check_branch
    %885 = sbr.rel (0) target = $region37
  $region36: #{lut_linear_forward.1} parent=0 // pred_region
    _
  $region37: #{lut_linear_forward.1} parent=0 // pred_fallthru
    _
  // Predicated region
  $region38: #{lut_linear_forward.1} parent=0 // pred_check
    _
  $region39: #{lut_linear_forward.1} parent=0 // pred_check_branch
    %887 = sbr.rel (0) target = $region41
  $region40: #{lut_linear_forward.1} parent=0 // pred_region
    _
  $region41: #{lut_linear_forward.1} parent=0 // pred_fallthru
    _
  // Predicated region
  $region42: #{lut_linear_forward.1} parent=0 // pred_check
    _
  $region43: #{lut_linear_forward.1} parent=0 // pred_check_branch
    %889 = sbr.rel (0) target = $region45
  $region44: #{lut_linear_forward.1} parent=0 // pred_region
    _
  $region45: #{lut_linear_forward.1} parent=0 // pred_fallthru
    _

</llo_original>
